<compile_context>
chip_gen: v7x
topology: tpu7x:2x2x1
jax: 0.10.0
libtpu: 0.0.40
codegen_flags: <defaults>
</compile_context>

<pallas_src>
import functools

import numpy as np
import jax
import jax.numpy as jnp
from jax import lax
from jax.experimental import pallas as pl
from jax.experimental.pallas import tpu as pltpu


def _hetero_loss_kernel(margin, chunk, groups_per_tile, label_num, needs_mask):
    margin = np.float32(margin)
    inv_c2 = np.float32(1.0 / (chunk * chunk))

    def kernel(f1_ref, f2_ref, o_ref):
        # f1_ref/f2_ref: (G, chunk, d) block of up to G whole groups.
        # mean(f1) - mean(f2) == sum(f1 - f2) / chunk; the /chunk**2 of the
        # squared distance is folded into one scalar multiply below.
        diff = f1_ref[...].astype(jnp.float32) - f2_ref[...].astype(jnp.float32)
        s = jnp.sum(diff, axis=1)                                # (G, d) sublane reduce
        dist = jnp.sum(s * s, axis=-1, keepdims=True) * inv_c2   # (G, 1) lane reduce
        hinge = jnp.maximum(dist - margin, jnp.float32(0.0))     # (G, 1)
        if needs_mask:
            # Ragged last tile: groups with global index >= label_num are
            # unspecified garbage from the partial DMA block -> mask them out.
            gid = (pl.program_id(0) * groups_per_tile
                   + lax.broadcasted_iota(jnp.int32, hinge.shape, 0))
            hinge = jnp.where(gid < label_num, hinge, jnp.float32(0.0))
        partial = jnp.sum(hinge)                                 # this tile's contribution
        # Lane-dense (1, 8, 128) output block -> unmasked store; summed in wrapper.
        o_ref[...] = jnp.broadcast_to(partial, o_ref.shape)

    return kernel


def _tpu_budgets():
    """Generation-aware (per-input block budget, scoped-VMEM limit) in bytes."""
    vmem = None
    try:
        vmem = int(pltpu.get_tpu_info().vmem_capacity_bytes)
    except Exception:
        vmem = None
    kind = ""
    try:
        kind = jax.devices()[0].device_kind.lower()
    except Exception:
        pass
    if (vmem is not None and vmem <= 80 * 1024 * 1024) or "v7" in kind:
        # v7x-class: 64 MiB VMEM/TC, ~3.2 TB/s HBM -> large blocks to amortize
        # the ~0.35us per-grid-step overhead; 2 inputs x 2 bufs x 10 MiB = 40 MiB.
        return 10 * 1024 * 1024, 48 * 1024 * 1024
    if "v5" in kind:
        # v5e: ~820 GB/s; 4 MiB blocks already put step overhead <4%.  The
        # explicit 32 MiB limit matters (scoped-VMEM default is only 16 MiB).
        return 4 * 1024 * 1024, 32 * 1024 * 1024
    # v6e-class (128 MiB VMEM, ~1.4 TB/s) or unknown: 8 MiB blocks.
    return 8 * 1024 * 1024, 64 * 1024 * 1024


def hetero_loss_l2(feat1, feat2, label1, label2=None, margin=0.1, *,
                   label_num=None, block_budget_bytes=None,
                   vmem_limit_bytes=None):
    """JAX/Pallas equivalent of hetero_loss(margin, dist_type='l2').forward.

    Pass `label_num` as a static Python int to allow jitting end-to-end; if it
    is None it is derived host-side from label1 (device->host sync).
    """
    del label2  # unused by the reference forward
    if label_num is None:
        # TODO(synk): host round-trip; prefer passing label_num statically.
        label_num = int(np.unique(np.asarray(label1)).shape[0])

    n, d = feat1.shape
    # TODO(synk): torch.chunk tolerates a ragged last chunk; this kernel
    # requires equal-sized, label-contiguous groups (the common case).
    assert n % label_num == 0, "feat_num must be divisible by label_num"
    chunk = n // label_num

    auto_block, auto_vmem = _tpu_budgets()
    if block_budget_bytes is None:
        block_budget_bytes = auto_block
    if vmem_limit_bytes is None:
        vmem_limit_bytes = auto_vmem

    # Free reshape: groups are contiguous rows.
    f1 = jnp.reshape(feat1, (label_num, chunk, d))
    f2 = jnp.reshape(feat2, (label_num, chunk, d))

    # Groups per grid step: as many as fit the per-input block budget.  No
    # divisor-of-label_num restriction: a ragged last tile is masked in-kernel.
    bytes_per_group = int(chunk * d * np.dtype(feat1.dtype).itemsize)
    groups_per_tile = max(1, min(label_num,
                                 int(block_budget_bytes // max(bytes_per_group, 1))))
    num_tiles = -(-label_num // groups_per_tile)          # ceil div, static
    needs_mask = (label_num % groups_per_tile) != 0

    block_bytes = groups_per_tile * bytes_per_group
    # Small-block regime is DMA-issue-latency bound, not bandwidth bound:
    # keep a 3rd buffer in flight.  No benefit once blocks are multi-MiB.
    use_triple = (block_bytes < 512 * 1024) and (num_tiles >= 3)
    if use_triple:
        in_spec = pl.BlockSpec((groups_per_tile, chunk, d), lambda i: (i, 0, 0),
                               pipeline_mode=pl.Buffered(3))
    else:
        in_spec = pl.BlockSpec((groups_per_tile, chunk, d), lambda i: (i, 0, 0))

    # Make sure the pipeline's buffers actually fit under the scoped limit.
    bufs = 3 if use_triple else 2
    vmem_limit_bytes = int(max(vmem_limit_bytes,
                               2 * bufs * block_bytes + (2 << 20)))

    partials = pl.pallas_call(
        _hetero_loss_kernel(float(margin), chunk, groups_per_tile,
                            label_num, needs_mask),
        out_shape=jax.ShapeDtypeStruct((num_tiles, 8, 128), jnp.float32),
        grid_spec=pltpu.PrefetchScalarGridSpec(
            num_scalar_prefetch=0,
            grid=(num_tiles,),
            in_specs=[in_spec, in_spec],
            out_specs=pl.BlockSpec((1, 8, 128), lambda i: (i, 0, 0)),
        ),
        compiler_params=pltpu.CompilerParams(
            # Independent per-tile partials -> parallel grid axis.
            # TODO(synk): on v7x, verify both TensorCores are used; if one is
            # idle, switch to pltpu.CORE_PARALLEL / pl.core_map.
            dimension_semantics=("parallel",),
            vmem_limit_bytes=vmem_limit_bytes,
        ),
    )(f1, f2)

    # Tiny final reduction over per-tile partial sums (num_tiles scalars).
    return jnp.sum(partials[:, 0, 0])


def _reference(feat1, feat2, label_num, margin=0.1):
    """Pure-numpy reference mirroring the PyTorch forward (l2)."""
    f1 = np.asarray(feat1).astype(np.float64)
    f2 = np.asarray(feat2).astype(np.float64)
    c1 = np.array_split(f1, label_num, axis=0)
    c2 = np.array_split(f2, label_num, axis=0)
    total = 0.0
    for i in range(label_num):
        di = np.sum((c1[i].mean(axis=0) - c2[i].mean(axis=0)) ** 2)
        total += max(0.0, di - margin)
    return total


if __name__ == "__main__":
    key = jax.random.PRNGKey(0)
    k1, k2, k3, k4 = jax.random.split(key, 4)
    margin = 0.1

    # Case 1: 4 identities x 8 samples each, 128-dim features; jitted
    # end-to-end with a static label_num (no per-call host np.unique).
    label_num, chunk, d = 4, 8, 128
    feat1 = jax.random.normal(k1, (label_num * chunk, d), dtype=jnp.float32)
    feat2 = jax.random.normal(k2, (label_num * chunk, d), dtype=jnp.float32)
    label1 = jnp.repeat(jnp.arange(label_num, dtype=jnp.int32), chunk)
    label2 = label1
    ref = _reference(feat1, feat2, label_num, margin)

    loss_fn = jax.jit(functools.partial(hetero_loss_l2, margin=margin,
                                        label_num=label_num))
    loss = jax.block_until_ready(loss_fn(feat1, feat2, label1, label2))
    assert np.allclose(np.asarray(loss), ref, rtol=1e-4, atol=1e-4), (loss, ref)

    # Case 2: tiny budget -> one group per tile; exercises the multi-tile
    # parallel path with 3-deep input buffering and the host label_num fallback.
    bytes_per_group = chunk * d * 4
    loss_tiled = jax.block_until_ready(
        hetero_loss_l2(feat1, feat2, label1, label2, margin=margin,
                       block_budget_bytes=bytes_per_group))
    assert np.allclose(np.asarray(loss_tiled), ref, rtol=1e-4, atol=1e-4), (loss_tiled, ref)

    # Case 3: label_num (5) not a multiple of groups_per_tile (2) -> ragged
    # last tile handled by the in-kernel group mask.
    label_num3 = 5
    f1r = jax.random.normal(k3, (label_num3 * chunk, d), dtype=jnp.float32)
    f2r = jax.random.normal(k4, (label_num3 * chunk, d), dtype=jnp.float32)
    lab3 = jnp.repeat(jnp.arange(label_num3, dtype=jnp.int32), chunk)
    ref3 = _reference(f1r, f2r, label_num3, margin)
    loss3 = jax.block_until_ready(
        hetero_loss_l2(f1r, f2r, lab3, lab3, margin=margin,
                       label_num=label_num3,
                       block_budget_bytes=2 * bytes_per_group))
    assert np.allclose(np.asarray(loss3), ref3, rtol=1e-4, atol=1e-4), (loss3, ref3)

    # Case 4: bf16 streaming path (half the HBM bytes; math stays f32).
    f1b = feat1.astype(jnp.bfloat16)
    f2b = feat2.astype(jnp.bfloat16)
    refb = _reference(f1b, f2b, label_num, margin)
    lossb = jax.block_until_ready(
        hetero_loss_l2(f1b, f2b, label1, label2, margin=margin,
                       label_num=label_num))
    assert np.allclose(np.asarray(lossb), refb, rtol=1e-3, atol=1e-3), (lossb, refb)

    print("KERNEL_OK")
</pallas_src>

<mosaic_0001>
module attributes {stable_mosaic.version = 11 : i64} {
  func.func @kernel(%arg0: i32, %arg1: memref<4x8x128xf32, #tpu.memory_space<vmem>>, %arg2: memref<4x8x128xf32, #tpu.memory_space<vmem>>, %arg3: memref<1x8x128xf32, #tpu.memory_space<vmem>>) attributes {dimension_semantics = [#tpu.dimension_semantics<parallel>], iteration_bounds = array<i64: 1>, scalar_prefetch = 0 : i64, scratch_operands = 0 : i64, tpu.core_type = #tpu.core_type<tc>, window_params = [{transform_indices = @transform_0, window_bounds = array<i64: 4, 8, 128>}, {transform_indices = @transform_1, window_bounds = array<i64: 4, 8, 128>}, {transform_indices = @transform_2, window_bounds = array<i64: 1, 8, 128>}]} {
    %c0 = arith.constant 0 : index
    %c0_0 = arith.constant 0 : index
    %c0_1 = arith.constant 0 : index
    %0 = vector.load %arg1[%c0, %c0_0, %c0_1] : memref<4x8x128xf32, #tpu.memory_space<vmem>>, vector<4x8x128xf32>
    %c0_2 = arith.constant 0 : index
    %c0_3 = arith.constant 0 : index
    %c0_4 = arith.constant 0 : index
    %1 = vector.load %arg2[%c0_2, %c0_3, %c0_4] : memref<4x8x128xf32, #tpu.memory_space<vmem>>, vector<4x8x128xf32>
    %2 = arith.subf %0, %1 : vector<4x8x128xf32>
    %cst = arith.constant dense<0.000000e+00> : vector<4x128xf32>
    %3 = vector.multi_reduction <add>, %2, %cst [1] : vector<4x8x128xf32> to vector<4x128xf32>
    %4 = arith.mulf %3, %3 : vector<4x128xf32>
    %cst_5 = arith.constant dense<0.000000e+00> : vector<4xf32>
    %5 = vector.multi_reduction <add>, %4, %cst_5 [1] : vector<4x128xf32> to vector<4xf32>
    %6 = vector.shape_cast %5 : vector<4xf32> to vector<4x1xf32>
    %cst_6 = arith.constant 1.562500e-02 : f32
    %7 = vector.broadcast %cst_6 : f32 to vector<4x1xf32>
    %8 = arith.mulf %6, %7 : vector<4x1xf32>
    %cst_7 = arith.constant 1.000000e-01 : f32
    %9 = vector.broadcast %cst_7 : f32 to vector<4x1xf32>
    %10 = arith.subf %8, %9 : vector<4x1xf32>
    %cst_8 = arith.constant 0.000000e+00 : f32
    %11 = vector.broadcast %cst_8 : f32 to vector<4x1xf32>
    %12 = arith.maximumf %10, %11 : vector<4x1xf32>
    %13 = vector.shape_cast %12 : vector<4x1xf32> to vector<1x4x1xf32>
    %cst_9 = arith.constant dense<0.000000e+00> : vector<1xf32>
    %14 = vector.multi_reduction <add>, %13, %cst_9 [1, 2] : vector<1x4x1xf32> to vector<1xf32>
    %15 = vector.shape_cast %14 : vector<1xf32> to vector<1x1x1xf32>
    %16 = vector.extract %15[0, 0, 0] : f32 from vector<1x1x1xf32>
    %17 = vector.broadcast %16 : f32 to vector<1x8x128xf32>
    %c0_10 = arith.constant 0 : index
    %c0_11 = arith.constant 0 : index
    %c0_12 = arith.constant 0 : index
    %18 = vector.load %arg3[%c0_10, %c0_11, %c0_12] : memref<1x8x128xf32, #tpu.memory_space<vmem>>, vector<1x8x128xf32>
    tpu.vector_store %arg3[%c0_10, %c0_11, %c0_12], %17 {strides = array<i32>} : memref<1x8x128xf32, #tpu.memory_space<vmem>>, vector<1x8x128xf32>,
    return
  }
  func.func @transform_0(%arg0: i32) -> (i32, i32, i32) {
    %c0_i32 = arith.constant 0 : i32
    %c0_i32_0 = arith.constant 0 : i32
    %c0_i32_1 = arith.constant 0 : i32
    return %arg0, %c0_i32, %c0_i32_0 : i32, i32, i32
  }
  func.func @transform_1(%arg0: i32) -> (i32, i32, i32) {
    %c0_i32 = arith.constant 0 : i32
    %c0_i32_0 = arith.constant 0 : i32
    %c0_i32_1 = arith.constant 0 : i32
    return %arg0, %c0_i32, %c0_i32_0 : i32, i32, i32
  }
  func.func @transform_2(%arg0: i32) -> (i32, i32, i32) {
    %c0_i32 = arith.constant 0 : i32
    %c0_i32_0 = arith.constant 0 : i32
    %c0_i32_1 = arith.constant 0 : i32
    return %arg0, %c0_i32, %c0_i32_0 : i32, i32, i32
  }
}

</mosaic_0001>

<llo_original>
// kernel: hetero_loss_l2.1
$region0: #{hetero_loss_l2.1}
  #allocation0 [shape = 'u32[]', space=smem, size = 0x4, offset = 0x4, fixed_abs, tag = 'smem constant byte address 0x4 - core index']
  #allocation1 [shape = 'u32[144,128]{1,0:T(1,128)}', space=vmem, size = 0x12000, scoped, tag = 'internal scratch']
  %s0 = inlined_call_operand.hbm [shape: f32[4,8,128], index: 0, kind: input, shape index: {}]
  %s1 = inlined_call_operand.hbm [shape: f32[4,8,128], index: 1, kind: input, shape index: {}]
  %s2 = inlined_call_operand.hbm [shape: f32[1,8,128], index: 2, kind: output, shape index: {}]
  %s3 = sld [smem:[#allocation0]]
  $region26: #{hetero_loss_l2.1} parent=0
    _
  %s5 = ssub.s32 1, %s3
  %s6 = scalar_select 0, %s5, %s3
  $region1: #{hetero_loss_l2.1} parent=0
    #allocation2 [shape = 'u8[16384]{0}', space=vmem, size = 0x4000, scoped, tag = 'input window, operand 0, single buffered']
    #allocation3 [shape = 's32[1]{0}', space=sflag, size = 0x4, scoped, tag = 'scoped memory for hetero_loss_l2.1']
    #allocation4 [shape = 's32[1]{0}', space=sflag, size = 0x4, scoped, tag = 'scoped memory for hetero_loss_l2.1']
    #allocation5 [shape = 'u8[16384]{0}', space=vmem, size = 0x4000, scoped, tag = 'input window, operand 1, single buffered']
    #allocation6 [shape = 's32[1]{0}', space=sflag, size = 0x4, scoped, tag = 'scoped memory for hetero_loss_l2.1']
    #allocation7 [shape = 'u8[4096]{0}', space=vmem, size = 0x1000, scoped, tag = 'output window, operand 0, single buffered']
    %7 = vsyncpa [#allocation3], 0
    %8 = vsyncpa [#allocation6], 0
    %9 = vsyncpa [#allocation4], 0
    // Predicated region
    $region2: #{hetero_loss_l2.1} parent=1 // pred_check
      _
    $region3: #{hetero_loss_l2.1} parent=1 // pred_check_branch
      %11 = sbr.rel (0) target = $region5
    $region4: #{hetero_loss_l2.1} parent=1 // pred_region
      %s13 = ssub.s32 512, 512
      %14 = vsyncadd [#allocation3], %s13
      %s15 = sshll.u32 [#allocation2], 4
      %s16 = int_to_ptr.vmem [resolvable:$true] %s15
      %21 = dma.hbm_to_vmem [thread:$0]  %s0, 512, %s16, [#allocation3], 128, 128, 8
    $region5: #{hetero_loss_l2.1} parent=1 // pred_fallthru
      _
    // Predicated region
    $region6: #{hetero_loss_l2.1} parent=1 // pred_check
      _
    $region7: #{hetero_loss_l2.1} parent=1 // pred_check_branch
      %23 = sbr.rel (0) target = $region9
    $region8: #{hetero_loss_l2.1} parent=1 // pred_region
      %s25 = ssub.s32 512, 512
      %26 = vsyncadd [#allocation6], %s25
      %s27 = sshll.u32 [#allocation5], 4
      %s28 = int_to_ptr.vmem [resolvable:$true] %s27
      %33 = dma.hbm_to_vmem [thread:$0]  %s1, 512, %s28, [#allocation6], 128, 128, 8
    $region9: #{hetero_loss_l2.1} parent=1 // pred_fallthru
      _
    // Predicated region
    $region10: #{hetero_loss_l2.1} parent=1 // pred_check
      _
    $region11: #{hetero_loss_l2.1} parent=1 // pred_check_branch
      %35 = sbr.rel (0) target = $region13
    $region12: #{hetero_loss_l2.1} parent=1 // pred_region
      %36 = dma.done [#allocation3], 512
    $region13: #{hetero_loss_l2.1} parent=1 // pred_fallthru
      _
    // Predicated region
    $region14: #{hetero_loss_l2.1} parent=1 // pred_check
      _
    $region15: #{hetero_loss_l2.1} parent=1 // pred_check_branch
      %38 = sbr.rel (0) target = $region17
    $region16: #{hetero_loss_l2.1} parent=1 // pred_region
      %39 = dma.done [#allocation6], 512
    $region17: #{hetero_loss_l2.1} parent=1 // pred_fallthru
      _
    %v40 = vld [vmem:[#allocation2] sm:$0xff]
    %v41 = vld [vmem:[#allocation2 + $0x8] sm:$0xff]
    %v42 = vld [vmem:[#allocation2 + $0x10] sm:$0xff]
    %v43 = vld [vmem:[#allocation2 + $0x18] sm:$0xff]
    %v44 = vld [vmem:[#allocation5] sm:$0xff]
    %v45 = vld [vmem:[#allocation5 + $0x8] sm:$0xff]
    %v46 = vld [vmem:[#allocation5 + $0x10] sm:$0xff]
    %v47 = vld [vmem:[#allocation5 + $0x18] sm:$0xff]
    %v48 = vsub.f32 %v40, %v44
    %v49 = vsub.f32 %v41, %v45
    %v50 = vsub.f32 %v42, %v46
    %v51 = vsub.f32 %v43, %v47
    %v52 = vrot.slane %v48, 4
    %v53 = vadd.f32 %v48, %v52
    %v54 = vrot.slane %v53, 2
    %v55 = vadd.f32 %v53, %v54
    %v56 = vrot.slane %v55, 1
    %v57 = vadd.f32 %v55, %v56
    %v58 = vrot.slane %v49, 4
    %v59 = vadd.f32 %v49, %v58
    %v60 = vrot.slane %v59, 2
    %v61 = vadd.f32 %v59, %v60
    %v62 = vrot.slane %v61, 1
    %v63 = vadd.f32 %v61, %v62
    %v64 = vrot.slane %v50, 4
    %v65 = vadd.f32 %v50, %v64
    %v66 = vrot.slane %v65, 2
    %v67 = vadd.f32 %v65, %v66
    %v68 = vrot.slane %v67, 1
    %v69 = vadd.f32 %v67, %v68
    %v70 = vrot.slane %v51, 4
    %v71 = vadd.f32 %v51, %v70
    %v72 = vrot.slane %v71, 2
    %v73 = vadd.f32 %v71, %v72
    %v74 = vrot.slane %v73, 1
    %v75 = vadd.f32 %v73, %v74
    %v76 = vmul.f32 %v57, %v57
    %v77 = vmul.f32 %v63, %v63
    %v78 = vmul.f32 %v69, %v69
    %v79 = vmul.f32 %v75, %v75
    %vm84 = vcmask 1041409
    %v85 = vsel %vm84, %v77, %v76
    %vm86 = vcmask 1042434
    %v87 = vsel %vm86, %v78, %v85
    %vm88 = vcmask 1043459
    %v89 = vsel %vm88, %v79, %v87
    %vm91 = vcmask 1043456
    %v92 = vsel %vm91, %v89, 0.0
    %93 = vadd.xlane.f32.xlu0 %v92
    %v94 = vpop.xlane.xlu0 %93
    %v95 = vmul.f32 %v94, 0.015625
    %v96 = vsub.f32 %v95, 0.1
    %v97 = vmax.f32 %v96, 0.0
    %vm98 = vcmask 3072
    %v99 = vsel %vm98, %v97, 0.0
    %100 = vadd.xlane.f32.xlu0 %v99
    %v101 = vpop.xlane.xlu0 %100
    %v102 = vrot.slane %v101, 4
    %v103 = vadd.f32 %v101, %v102
    %v104 = vrot.slane %v103, 2
    %v105 = vadd.f32 %v103, %v104
    %v106 = vrot.slane %v105, 1
    %v107 = vadd.f32 %v105, %v106
    %s108 = vtos %v107
    %v109 = vstv %s108
    %110 = vst [vmem:[#allocation7] sm:$0xff] %v109
    // Predicated region
    $region18: #{hetero_loss_l2.1} parent=1 // pred_check
      _
    $region19: #{hetero_loss_l2.1} parent=1 // pred_check_branch
      %112 = sbr.rel (0) target = $region21
    $region20: #{hetero_loss_l2.1} parent=1 // pred_region
      %s114 = ssub.s32 128, 128
      %115 = vsyncadd [#allocation4], %s114
      %s117 = sshll.u32 [#allocation7], 4
      %s118 = int_to_ptr.vmem [resolvable:$true] %s117
      %120 = dma.vmem_to_hbm [thread:$0]  %s118, 128, %s2, [#allocation4]
    $region21: #{hetero_loss_l2.1} parent=1 // pred_fallthru
      _
    // Predicated region
    $region22: #{hetero_loss_l2.1} parent=1 // pred_check
      _
    $region23: #{hetero_loss_l2.1} parent=1 // pred_check_branch
      %122 = sbr.rel (0) target = $region25
    $region24: #{hetero_loss_l2.1} parent=1 // pred_region
      %123 = dma.done [#allocation4], 128
    $region25: #{hetero_loss_l2.1} parent=1 // pred_fallthru
      _
    %124 = vsyncpa [#allocation3], 1
    %125 = vsyncpa [#allocation6], 1
    %126 = vsyncpa [#allocation4], 1

</llo_original>
